<compile_context>
chip_gen: v5e
topology: v5e:2x2
jax: 0.10.0
libtpu: 0.0.40
codegen_flags: <defaults>
</compile_context>

<pallas_src>
import functools

import jax
import jax.numpy as jnp
from jax.experimental import pallas as pl
from jax.experimental.pallas import tpu as pltpu


def _round_up(x, m):
    return ((x + m - 1) // m) * m


def _vmem_limit(est_bytes):
    # Request what we estimate (floor 32 MiB), but never the full 64 MiB of
    # v7x: leave ~8 MiB headroom for Mosaic internal scratch / double-buffer
    # bookkeeping.
    return int(min(56 << 20, max(32 << 20, est_bytes)))


def _default_score_dtype():
    """bf16 scoring pays off on chips with bf16 VPU/EUP/MXU (v6e, v7x);
    keep f32 elsewhere (v5e has no bf16 VPU/EUP)."""
    try:
        kind = jax.devices()[0].device_kind.lower()
    except Exception:
        return jnp.float32
    if ("v6" in kind) or ("v7" in kind) or ("tpu7" in kind):
        return jnp.bfloat16
    return jnp.float32


def _pick_tm(num_nodes, row_tile=None):
    """Row-tile size. Bigger tiles amortize per-grid-step overhead on large
    graphs; always keep >= 2 row tiles so both TensorCores get work."""
    if row_tile is None:
        row_tile = 256 if num_nodes >= 2048 else 128
    tm = min(int(row_tile), _round_up(max(num_nodes // 2, 1), 8))
    return max(8, _round_up(tm, 8))


# ----------------------------- projection ----------------------------------

def _gat_project_kernel(x_ref, w_ref, amat_ref, xp_ref, a_ref):
    """xp = x @ W; fused [a_src | a_dst] coefficients via one extra matmul."""
    xp = jnp.dot(x_ref[...].astype(jnp.float32), w_ref[...],
                 preferred_element_type=jnp.float32)            # [TM, H*C]
    xp_ref[...] = xp
    a_ref[...] = jnp.dot(xp, amat_ref[...],
                         preferred_element_type=jnp.float32)    # [TM, 2H]


def _att_to_mat(att):
    """[H, C] attention vector -> block-diagonal [H*C, H] matrix so that
    (xp @ mat)[:, h] == sum_c xp[:, h*C + c] * att[h, c]."""
    h, c = att.shape
    eye = jnp.eye(h, dtype=att.dtype)
    return (att[:, :, None] * eye[:, None, :]).reshape(h * c, h)


def gat_project(x, w, amat, *, tm):
    n_pad, in_c = x.shape
    hc = w.shape[1]
    two_h = amat.shape[1]
    est = (2 * tm * _round_up(in_c, 128) * 4           # x tiles (double buf)
           + 2 * _round_up(in_c, 8) * _round_up(hc, 128) * 4      # W
           + 2 * _round_up(hc, 8) * _round_up(two_h, 128) * 4     # amat
           + 2 * tm * _round_up(hc, 128) * 4                      # xp out
           + 2 * tm * _round_up(two_h, 128) * 4                   # a out
           + (6 << 20))
    return pl.pallas_call(
        _gat_project_kernel,
        out_shape=(jax.ShapeDtypeStruct((n_pad, hc), jnp.float32),
                   jax.ShapeDtypeStruct((n_pad, two_h), jnp.float32)),
        grid=(n_pad // tm,),
        in_specs=[
            pl.BlockSpec((tm, in_c), lambda i: (i, 0)),      # x row tile
            pl.BlockSpec((in_c, hc), lambda i: (0, 0)),      # W (resident)
            pl.BlockSpec((hc, two_h), lambda i: (0, 0)),     # [a_src|a_dst]
        ],
        out_specs=(
            pl.BlockSpec((tm, hc), lambda i: (i, 0)),
            pl.BlockSpec((tm, two_h), lambda i: (i, 0)),
        ),
        compiler_params=pltpu.CompilerParams(
            dimension_semantics=("parallel",),
            vmem_limit_bytes=_vmem_limit(est)),
    )(x, w, amat)


# ----------------------------- attention ------------------------------------

def _gat_attn_kernel(adj_ref, xp_ref, asrc_ref, adst_ref, bias_ref,
                     out_ref, acc_sc, *, heads, concat, out_act, neg_slope,
                     score_dtype):
    h = pl.program_id(1)
    sd = score_dtype
    neg = jnp.asarray(neg_slope, sd)
    big_neg = jnp.asarray(-1e30, sd)

    # Attention logits for head h: dst coefficient (column) + src coeff (row),
    # LeakyReLU, then masked directly off the int8 adjacency tile.
    scores = adst_ref[...].astype(sd) + asrc_ref[...].astype(sd)  # [TM,1]+[1,N]
    scores = jnp.where(scores > 0, scores, scores * neg)          # LeakyReLU
    scores = jnp.where(adj_ref[...] > 0, scores, big_neg)         # mask

    m = jnp.max(scores, axis=-1, keepdims=True)
    p = jnp.exp(scores - m)                                       # [TM,N], sd
    denom = jnp.sum(p.astype(jnp.float32), axis=-1, keepdims=True)  # f32 acc
    # Aggregate with unnormalized weights; normalize after the matmul.
    out_h = jnp.dot(p, xp_ref[...], preferred_element_type=jnp.float32)
    out_h = out_h * pl.reciprocal(denom, approx=True)             # [TM,C] f32

    if concat:
        o = out_h + bias_ref[...]
        if out_act == "elu":
            o = jnp.where(o > 0, o, jnp.exp(o) - 1.0)
        out_ref[...] = o.astype(out_ref.dtype)
    else:
        # Mean over heads: accumulate in the VMEM f32 scratch and write the
        # narrow-lane output block exactly once per row tile.  Correct only
        # because `heads` is the innermost, "arbitrary" grid axis.
        @pl.when(h == 0)
        def _():
            acc_sc[...] = jnp.zeros_like(acc_sc)

        acc_sc[...] += out_h

        @pl.when(h == heads - 1)
        def _():
            o = acc_sc[...] * (1.0 / heads) + bias_ref[...]
            if out_act == "elu":
                o = jnp.where(o > 0, o, jnp.exp(o) - 1.0)
            elif out_act == "log_softmax":
                mx = jnp.max(o, axis=-1, keepdims=True)
                z = o - mx
                o = z - jnp.log(jnp.sum(jnp.exp(z), axis=-1, keepdims=True))
            out_ref[...] = o.astype(out_ref.dtype)


def gat_attention(adj_i8, xp, a_src, a_dst, bias, *, heads, out_c, concat,
                  out_act, tm, score_dtype, neg_slope=0.2):
    n_pad = adj_i8.shape[0]
    num_tiles = n_pad // tm
    use_bf16 = jnp.dtype(score_dtype) == jnp.dtype(jnp.bfloat16)
    sd_type = jnp.bfloat16 if use_bf16 else jnp.float32

    # Head axis becomes a leading (grid-indexed) axis: cheap XLA-side layout
    # plumbing on O(N*64) data.  Per-head slabs are streamed (not resident).
    xp3 = xp.reshape(n_pad, heads, out_c).transpose(1, 0, 2)      # [H, N, C]
    if use_bf16:
        xp3 = xp3.astype(jnp.bfloat16)
    asrc3 = a_src.T.reshape(heads, 1, n_pad)                      # [H, 1, N]
    adst3 = a_dst.T.reshape(heads, n_pad, 1)                      # [H, N, 1]

    if concat:
        bias3 = bias.reshape(heads, 1, out_c)
        bias_spec = pl.BlockSpec((None, 1, out_c), lambda i, h: (h, 0, 0))
        out_shape = jax.ShapeDtypeStruct((heads, n_pad, out_c), jnp.float32)
        out_spec = pl.BlockSpec((None, tm, out_c), lambda i, h: (h, i, 0))
    else:
        bias3 = bias.reshape(1, out_c)
        bias_spec = pl.BlockSpec((1, out_c), lambda i, h: (0, 0))
        out_shape = jax.ShapeDtypeStruct((n_pad, out_c), jnp.float32)
        out_spec = pl.BlockSpec((tm, out_c), lambda i, h: (i, 0))

    xp_isz = 2 if use_bf16 else 4
    est = (2 * tm * n_pad * 1                                # adj int8 tile
           + 2 * n_pad * _round_up(out_c, 128) * xp_isz      # per-head xp slab
           + 2 * 8 * n_pad * 4                               # a_src row
           + 2 * tm * 128 * 4                                # a_dst column
           + 2 * tm * _round_up(out_c, 128) * 4              # output block
           + tm * _round_up(out_c, 128) * 4                  # head-mean scratch
           + 6 * tm * n_pad * 4                              # scores/p temps
           + (6 << 20))

    kernel = functools.partial(_gat_attn_kernel, heads=heads, concat=concat,
                               out_act=out_act, neg_slope=neg_slope,
                               score_dtype=sd_type)
    out = pl.pallas_call(
        kernel,
        out_shape=out_shape,
        grid=(num_tiles, heads),
        in_specs=[
            pl.BlockSpec((tm, n_pad), lambda i, h: (i, 0)),             # adj tile (reused across heads)
            pl.BlockSpec((None, n_pad, out_c), lambda i, h: (h, 0, 0)), # xp slab, per head (streamed)
            pl.BlockSpec((None, 1, n_pad), lambda i, h: (h, 0, 0)),     # a_src row, per head
            pl.BlockSpec((None, tm, 1), lambda i, h: (h, i, 0)),        # a_dst column tile
            bias_spec,
        ],
        out_specs=out_spec,
        scratch_shapes=[pltpu.VMEM((tm, out_c), jnp.float32)],          # head-mean accumulator
        compiler_params=pltpu.CompilerParams(
            dimension_semantics=("parallel", "arbitrary"),
            vmem_limit_bytes=_vmem_limit(est)),
    )(adj_i8, xp3, asrc3, adst3, bias3)

    if concat:
        out = out.transpose(1, 0, 2).reshape(n_pad, heads * out_c)
    return out


def gat_layer(x, adj_i8, w, att_src, att_dst, bias, *, heads, out_c, concat,
              out_act, tm, score_dtype):
    amat = jnp.concatenate([_att_to_mat(att_src), _att_to_mat(att_dst)],
                           axis=1)                       # [H*C, 2H]
    xp, a_all = gat_project(x, w, amat, tm=tm)
    a_src = a_all[:, :heads]
    a_dst = a_all[:, heads:]
    return gat_attention(adj_i8, xp, a_src, a_dst, bias, heads=heads,
                         out_c=out_c, concat=concat, out_act=out_act, tm=tm,
                         score_dtype=score_dtype)


# ----------------------------- full network ---------------------------------

def build_adj(edge_index, num_nodes, n_pad):
    """Dense int8 mask: adj[dst, src] = 1 per edge src->dst, plus self-loops on
    real nodes (PyG add_self_loops=True). Padded rows/cols stay 0."""
    src, dst = edge_index[0], edge_index[1]
    adj = jnp.zeros((n_pad, n_pad), jnp.int8)
    adj = adj.at[dst, src].set(jnp.int8(1))
    idx = jnp.arange(num_nodes)
    adj = adj.at[idx, idx].set(jnp.int8(1))
    return adj


def prepare_graph(edge_index, num_nodes, *, row_tile=None):
    """Build the padded dense adjacency ONCE per graph (hoisted out of the
    per-forward path) and pick the row-tile size."""
    tm = _pick_tm(num_nodes, row_tile)
    n_pad = _round_up(num_nodes, tm)
    adj = build_adj(edge_index, num_nodes, n_pad)
    return adj, tm


def net_forward(params, x, adj_i8, *, tm, heads=8, hidden=8, score_dtype=None):
    num_nodes = x.shape[0]
    n_pad = adj_i8.shape[0]
    assert n_pad % tm == 0 and n_pad >= num_nodes
    if score_dtype is None:
        score_dtype = _default_score_dtype()

    x_p = jnp.pad(x, ((0, n_pad - num_nodes), (0, 0)))

    # F.dropout(p=0.6, training=False) == identity at inference.
    h1 = gat_layer(x_p, adj_i8, params["w1"], params["asrc1"], params["adst1"],
                   params["b1"], heads=heads, out_c=hidden, concat=True,
                   out_act="elu", tm=tm, score_dtype=score_dtype)
    out = gat_layer(h1, adj_i8, params["w2"], params["asrc2"], params["adst2"],
                    params["b2"], heads=heads, out_c=params["b2"].shape[0],
                    concat=False, out_act="log_softmax", tm=tm,
                    score_dtype=score_dtype)
    return out[:num_nodes]


# ----------------------------- pure-JAX reference ---------------------------

def _ref_gat_layer(x, adj_f, w, att_src, att_dst, bias, heads, out_c, concat):
    xp = (x @ w).reshape(-1, heads, out_c)                    # [N, H, C]
    a_src = jnp.einsum('nhc,hc->nh', xp, att_src)
    a_dst = jnp.einsum('nhc,hc->nh', xp, att_dst)
    e = a_dst[:, None, :] + a_src[None, :, :]                 # [dst, src, H]
    e = jnp.where(e > 0, e, 0.2 * e)
    e = jnp.where(adj_f[:, :, None] > 0, e, -1e30)
    p = jax.nn.softmax(e, axis=1)
    out = jnp.einsum('dsh,shc->dhc', p, xp)                   # [N, H, C]
    out = out.reshape(-1, heads * out_c) if concat else out.mean(axis=1)
    return out + bias


def _ref_net(params, x, adj_f, heads, hidden):
    h = jax.nn.elu(_ref_gat_layer(x, adj_f, params["w1"], params["asrc1"],
                                  params["adst1"], params["b1"],
                                  heads, hidden, True))
    o = _ref_gat_layer(h, adj_f, params["w2"], params["asrc2"],
                       params["adst2"], params["b2"],
                       heads, params["b2"].shape[0], False)
    return jax.nn.log_softmax(o, axis=-1)


if __name__ == "__main__":
    key = jax.random.PRNGKey(0)
    N, IN_C, OUT_C, HEADS, HID, E = 32, 16, 7, 8, 8, 64
    k = jax.random.split(key, 12)

    x = jax.random.normal(k[0], (N, IN_C), jnp.float32)
    src = jax.random.randint(k[1], (E,), 0, N)
    dst = jax.random.randint(k[2], (E,), 0, N)
    edge_index = jnp.stack([src, dst]).astype(jnp.int32)

    def glorot(kk, shape):
        fan = shape[0] + shape[-1]
        return jax.random.normal(kk, shape, jnp.float32) * jnp.sqrt(2.0 / fan)

    params = dict(
        # conv1: GATConv(IN_C, 8, heads=8, concat=True)
        w1=glorot(k[3], (IN_C, HEADS * HID)),
        asrc1=glorot(k[4], (HEADS, HID)),
        adst1=glorot(k[5], (HEADS, HID)),
        b1=0.1 * jax.random.normal(k[9], (HEADS * HID,), jnp.float32),
        # conv2: GATConv(64, OUT_C, heads=8, concat=False)
        w2=glorot(k[6], (HEADS * HID, HEADS * OUT_C)),
        asrc2=glorot(k[7], (HEADS, OUT_C)),
        adst2=glorot(k[8], (HEADS, OUT_C)),
        b2=0.1 * jax.random.normal(k[10], (OUT_C,), jnp.float32),
    )

    # Adjacency built once per graph and reused. row_tile=8 -> 4 row tiles x
    # 8 heads: exercises the pipelined grid.
    adj, tm = prepare_graph(edge_index, N, row_tile=8)

    # Pure-JAX dense-GAT reference.
    adj_f = jnp.zeros((N, N), jnp.float32).at[dst, src].set(1.0)
    adj_f = jnp.maximum(adj_f, jnp.eye(N, dtype=jnp.float32))
    ref = jax.block_until_ready(_ref_net(params, x, adj_f, HEADS, HID))

    # 1) strict f32 parity check.
    out = net_forward(params, x, adj, tm=tm, heads=HEADS, hidden=HID,
                      score_dtype=jnp.float32)
    out = jax.block_until_ready(out)
    assert out.shape == (N, OUT_C), out.shape
    assert jnp.allclose(jnp.sum(jnp.exp(out), axis=-1), 1.0, atol=1e-4)
    max_diff = float(jnp.max(jnp.abs(out - ref)))
    assert max_diff < 2.5e-2, f"f32 path: max |kernel - ref| = {max_diff}"

    # 2) bf16 scoring path (what v6e/v7x auto-select): looser tolerance.
    out_bf = net_forward(params, x, adj, tm=tm, heads=HEADS, hidden=HID,
                         score_dtype=jnp.bfloat16)
    out_bf = jax.block_until_ready(out_bf)
    assert out_bf.shape == (N, OUT_C), out_bf.shape
    max_diff_bf = float(jnp.max(jnp.abs(out_bf - ref)))
    assert max_diff_bf < 7.5e-2, f"bf16 path: max |kernel - ref| = {max_diff_bf}"

    print("KERNEL_OK")
</pallas_src>

<mosaic_0001>
module attributes {stable_mosaic.version = 11 : i64} {
  func.func @_gat_project_kernel(%arg0: i32, %arg1: memref<8x16xf32, #tpu.memory_space<vmem>>, %arg2: memref<16x64xf32, #tpu.memory_space<vmem>>, %arg3: memref<64x16xf32, #tpu.memory_space<vmem>>, %arg4: memref<8x64xf32, #tpu.memory_space<vmem>>, %arg5: memref<8x16xf32, #tpu.memory_space<vmem>>) attributes {dimension_semantics = [#tpu.dimension_semantics<parallel>], iteration_bounds = array<i64: 4>, scalar_prefetch = 0 : i64, scratch_operands = 0 : i64, tpu.core_type = #tpu.core_type<tc>, window_params = [{transform_indices = @transform_0, window_bounds = array<i64: 8, 16>}, {pipeline_mode = #tpu.pipeline_mode<synchronous>, transform_indices = @transform_1, window_bounds = array<i64: 16, 64>}, {pipeline_mode = #tpu.pipeline_mode<synchronous>, transform_indices = @transform_2, window_bounds = array<i64: 64, 16>}, {transform_indices = @transform_3, window_bounds = array<i64: 8, 64>}, {transform_indices = @transform_4, window_bounds = array<i64: 8, 16>}]} {
    %c0 = arith.constant 0 : index
    %c0_0 = arith.constant 0 : index
    %0 = vector.load %arg1[%c0, %c0_0] : memref<8x16xf32, #tpu.memory_space<vmem>>, vector<8x16xf32>
    %c0_1 = arith.constant 0 : index
    %c0_2 = arith.constant 0 : index
    %1 = vector.load %arg2[%c0_1, %c0_2] : memref<16x64xf32, #tpu.memory_space<vmem>>, vector<16x64xf32>
    %cst = arith.constant dense<0.000000e+00> : vector<8x64xf32>
    %2 = tpu.matmul %0, %1, %cst {dimension_numbers = #tpu.dot_dimension_numbers<[1], [0], [0], [1], [0, 0, 1, 1], [], []>} : vector<8x16xf32>, vector<16x64xf32>, vector<8x64xf32> -> vector<8x64xf32>
    %c0_3 = arith.constant 0 : index
    %c0_4 = arith.constant 0 : index
    %3 = vector.load %arg4[%c0_3, %c0_4] : memref<8x64xf32, #tpu.memory_space<vmem>>, vector<8x64xf32>
    tpu.vector_store %arg4[%c0_3, %c0_4], %2 {strides = array<i32>} : memref<8x64xf32, #tpu.memory_space<vmem>>, vector<8x64xf32>,
    %c0_5 = arith.constant 0 : index
    %c0_6 = arith.constant 0 : index
    %4 = vector.load %arg3[%c0_5, %c0_6] : memref<64x16xf32, #tpu.memory_space<vmem>>, vector<64x16xf32>
    %cst_7 = arith.constant dense<0.000000e+00> : vector<8x16xf32>
    %5 = tpu.matmul %2, %4, %cst_7 {dimension_numbers = #tpu.dot_dimension_numbers<[1], [0], [0], [1], [0, 0, 1, 1], [], []>} : vector<8x64xf32>, vector<64x16xf32>, vector<8x16xf32> -> vector<8x16xf32>
    %c0_8 = arith.constant 0 : index
    %c0_9 = arith.constant 0 : index
    %6 = vector.load %arg5[%c0_8, %c0_9] : memref<8x16xf32, #tpu.memory_space<vmem>>, vector<8x16xf32>
    tpu.vector_store %arg5[%c0_8, %c0_9], %5 {strides = array<i32>} : memref<8x16xf32, #tpu.memory_space<vmem>>, vector<8x16xf32>,
    return
  }
  func.func @transform_0(%arg0: i32) -> (i32, i32) {
    %c0_i32 = arith.constant 0 : i32
    %c0_i32_0 = arith.constant 0 : i32
    return %arg0, %c0_i32 : i32, i32
  }
  func.func @transform_1(%arg0: i32) -> (i32, i32) {
    %c0_i32 = arith.constant 0 : i32
    %c0_i32_0 = arith.constant 0 : i32
    %c0_i32_1 = arith.constant 0 : i32
    return %c0_i32, %c0_i32_0 : i32, i32
  }
  func.func @transform_2(%arg0: i32) -> (i32, i32) {
    %c0_i32 = arith.constant 0 : i32
    %c0_i32_0 = arith.constant 0 : i32
    %c0_i32_1 = arith.constant 0 : i32
    return %c0_i32, %c0_i32_0 : i32, i32
  }
  func.func @transform_3(%arg0: i32) -> (i32, i32) {
    %c0_i32 = arith.constant 0 : i32
    %c0_i32_0 = arith.constant 0 : i32
    return %arg0, %c0_i32 : i32, i32
  }
  func.func @transform_4(%arg0: i32) -> (i32, i32) {
    %c0_i32 = arith.constant 0 : i32
    %c0_i32_0 = arith.constant 0 : i32
    return %arg0, %c0_i32 : i32, i32
  }
}

</mosaic_0001>

<llo_original>
// kernel: tpu_custom_call.1
$region0: #{tpu_custom_call.1}
  #allocation0 [shape = 'u32[]', space=smem, size = 0x4, offset = 0x4, fixed_abs, tag = 'smem constant byte address 0x4 - core index']
  #allocation1 [shape = 'u32[72,128]{1,0:T(1,128)}', space=vmem, size = 0x9000, scoped, tag = 'internal scratch']
  %s0 = inlined_call_operand.vmem [shape: f32[32,16], index: 0, kind: input, shape index: {}]
  %s1 = inlined_call_operand.vmem [shape: f32[16,64], index: 1, kind: input, shape index: {}]
  %s2 = inlined_call_operand.vmem [shape: f32[64,16], index: 2, kind: input, shape index: {}]
  %s3 = inlined_call_operand.hbm [shape: f32[32,64], index: 3, kind: output, shape index: {0}]
  %s4 = inlined_call_operand.vmem [shape: f32[32,16], index: 4, kind: output, shape index: {1}]
  %5 = xla_tuple %s3, %s4
  %s6 = sld [smem:[#allocation0]]
  $region53: #{tpu_custom_call.1} parent=0
    _
  %s8 = ssub.s32 1, %s6
  %s9 = scalar_select 0, %s8, %s6
  $region1: #{tpu_custom_call.1} parent=0
    #allocation2 [shape = 'u8[8192]{0}', space=vmem, size = 0x2000, scoped, tag = 'output window, operand 0']
    #allocation3 [shape = 's32[2]{0}', space=sflag, size = 0x8, scoped, tag = 'scoped memory for tpu_custom_call.1']
    %10 = vsyncpa [#allocation3], 0
    %s11 = scalar_lea.sflag [#allocation3], 1
    %12 = vsyncpa %s11, 0
    loop: start=0, step=1, limit=6
    $region2: #{tpu_custom_call.1} parent=1 // loop_pre_header
      _
    $region3: #{tpu_custom_call.1} parent=1 // loop_header
      %s14 = sphi 0, %s18
      %p15 = scmp.ge.s32.totalorder %s14, 6
      %s24 = sphi 0, %s26
      %s27 = sphi 0, %s24
      %s28 = sphi 0, %s27
      %s44 = sphi 0, %s28
      %s48 = sphi 0, %s48
      %s50 = sphi 0, %s48
      %s51 = sphi 0, %s50
      %s65 = sphi 0, %s51
      %s69 = sphi 0, %s69
      %s71 = sphi 0, %s69
      %s72 = sphi 0, %s71
      %s86 = sphi 0, %s72
      %s92 = sphi 0, %s94
      %s95 = sphi 0, %s92
      %s96 = sphi 0, %s95
      %s112 = sphi 0, %s96
      %s118 = sphi 0, %s120
      %s121 = sphi 0, %s118
      %s122 = sphi 0, %s121
      %s138 = sphi 0, %s122
    $region4: #{tpu_custom_call.1} parent=1 // loop_header_branch
      %17 = sbr.rel (%p15) target = $region8
    $region5: #{tpu_custom_call.1} parent=1 // loop_body
      %s19 = ssub.s32 %s14, 1
      %s20 = ssub.s32 %s14, 2
      %s21 = sadd.s32 %s14, 1
      %s22 = ssub.s32 %s14, %s21
      %p23 = scmp.eq.s32.totalorder %s22, 0
      %s25 = sadd.s32 %s24, 1
      %s26 = scalar_select %p23, %s24, %s25
      %p29 = pneg %p23
      %p30 = scmp.eq.s32.totalorder %s14, 3
      %p31 = por %p29, %p30
      %p32 = scmp.ne.s32.totalorder %s24, %s27
      %p33 = scmp.eq.s32.totalorder %s14, 0
      %p34 = por %p32, %p33
      %p35 = scmp.ne.s32.totalorder %s24, %s27
      %p36 = scmp.eq.s32.totalorder %s19, 3
      %p37 = por %p35, %p36
      %p38 = scmp.ne.s32.totalorder %s27, %s28
      %p39 = scmp.eq.s32.totalorder %s19, 0
      %p40 = por %p38, %p39
      %p41 = scmp.ne.s32.totalorder %s27, %s28
      %p42 = scmp.eq.s32.totalorder %s20, 3
      %p43 = por %p41, %p42
      %p45 = scmp.ne.s32.totalorder %s28, %s44
      %p46 = scmp.eq.s32.totalorder %s20, 0
      %p47 = por %p45, %p46
      %s49 = sadd.s32 %s48, 1
      %p52 = scmp.eq.s32.totalorder %s14, 3
      %p53 = scmp.ne.s32.totalorder %s48, %s50
      %p54 = scmp.eq.s32.totalorder %s14, 0
      %p55 = por %p53, %p54
      %p56 = scmp.ne.s32.totalorder %s48, %s50
      %p57 = scmp.eq.s32.totalorder %s19, 3
      %p58 = por %p56, %p57
      %p59 = scmp.ne.s32.totalorder %s50, %s51
      %p60 = scmp.eq.s32.totalorder %s19, 0
      %p61 = por %p59, %p60
      %p62 = scmp.ne.s32.totalorder %s50, %s51
      %p63 = scmp.eq.s32.totalorder %s20, 3
      %p64 = por %p62, %p63
      %p66 = scmp.ne.s32.totalorder %s51, %s65
      %p67 = scmp.eq.s32.totalorder %s20, 0
      %p68 = por %p66, %p67
      %s70 = sadd.s32 %s69, 1
      %p73 = scmp.eq.s32.totalorder %s14, 3
      %p74 = scmp.ne.s32.totalorder %s69, %s71
      %p75 = scmp.eq.s32.totalorder %s14, 0
      %p76 = por %p74, %p75
      %p77 = scmp.ne.s32.totalorder %s69, %s71
      %p78 = scmp.eq.s32.totalorder %s19, 3
      %p79 = por %p77, %p78
      %p80 = scmp.ne.s32.totalorder %s71, %s72
      %p81 = scmp.eq.s32.totalorder %s19, 0
      %p82 = por %p80, %p81
      %p83 = scmp.ne.s32.totalorder %s71, %s72
      %p84 = scmp.eq.s32.totalorder %s20, 3
      %p85 = por %p83, %p84
      %p87 = scmp.ne.s32.totalorder %s72, %s86
      %p88 = scmp.eq.s32.totalorder %s20, 0
      %p89 = por %p87, %p88
      %s90 = ssub.s32 %s14, %s21
      %p91 = scmp.eq.s32.totalorder %s90, 0
      %s93 = sadd.s32 %s92, 1
      %s94 = scalar_select %p91, %s92, %s93
      %p97 = pneg %p91
      %p98 = scmp.eq.s32.totalorder %s14, 3
      %p99 = por %p97, %p98
      %p100 = scmp.ne.s32.totalorder %s92, %s95
      %p101 = scmp.eq.s32.totalorder %s14, 0
      %p102 = por %p100, %p101
      %p103 = scmp.ne.s32.totalorder %s92, %s95
      %p104 = scmp.eq.s32.totalorder %s19, 3
      %p105 = por %p103, %p104
      %p106 = scmp.ne.s32.totalorder %s95, %s96
      %p107 = scmp.eq.s32.totalorder %s19, 0
      %p108 = por %p106, %p107
      %p109 = scmp.ne.s32.totalorder %s95, %s96
      %p110 = scmp.eq.s32.totalorder %s20, 3
      %p111 = por %p109, %p110
      %p113 = scmp.ne.s32.totalorder %s96, %s112
      %p114 = scmp.eq.s32.totalorder %s20, 0
      %p115 = por %p113, %p114
      %s116 = ssub.s32 %s14, %s21
      %p117 = scmp.eq.s32.totalorder %s116, 0
      %s119 = sadd.s32 %s118, 1
      %s120 = scalar_select %p117, %s118, %s119
      %p123 = pneg %p117
      %p124 = scmp.eq.s32.totalorder %s14, 3
      %p125 = por %p123, %p124
      %p126 = scmp.ne.s32.totalorder %s118, %s121
      %p127 = scmp.eq.s32.totalorder %s14, 0
      %p128 = por %p126, %p127
      %p129 = scmp.ne.s32.totalorder %s118, %s121
      %p130 = scmp.eq.s32.totalorder %s19, 3
      %p131 = por %p129, %p130
      %p132 = scmp.ne.s32.totalorder %s121, %s122
      %p133 = scmp.eq.s32.totalorder %s19, 0
      %p134 = por %p132, %p133
      %p135 = scmp.ne.s32.totalorder %s121, %s122
      %p136 = scmp.eq.s32.totalorder %s20, 3
      %p137 = por %p135, %p136
      %p139 = scmp.ne.s32.totalorder %s122, %s138
      %p140 = scmp.eq.s32.totalorder %s20, 0
      %p141 = por %p139, %p140
      %p142 = scmp.le.s32.totalorder 1, %s14
      %p143 = scmp.lt.s32.totalorder %s14, 5
      %p144 = pnand %p142, %p143
      %p145 = pneg %p144
      // Predicated region
      $region9: #{tpu_custom_call.1} parent=5 // pred_check
        _
      $region10: #{tpu_custom_call.1} parent=5 // pred_check_branch
        %147 = sbr.rel (%p144) target = $region12
      $region11: #{tpu_custom_call.1} parent=5 // pred_region
        %s148 = ssub.s32 %s14, 1
        // Predicated region
        $region13: #{tpu_custom_call.1} parent=11 // pred_check
          %p149 = pneg %p61
        $region14: #{tpu_custom_call.1} parent=11 // pred_check_branch
          %151 = sbr.rel (%p149) target = $region16
        $region15: #{tpu_custom_call.1} parent=11 // pred_region
          _
        $region16: #{tpu_custom_call.1} parent=11 // pred_fallthru
          _
        // Predicated region
        $region17: #{tpu_custom_call.1} parent=11 // pred_check
          %p152 = pneg %p82
        $region18: #{tpu_custom_call.1} parent=11 // pred_check_branch
          %154 = sbr.rel (%p152) target = $region20
        $region19: #{tpu_custom_call.1} parent=11 // pred_region
          _
        $region20: #{tpu_custom_call.1} parent=11 // pred_fallthru
          _
      $region12: #{tpu_custom_call.1} parent=5 // pred_fallthru
        _
      %p155 = scmp.lt.s32.totalorder %s14, 4
      // Predicated region
      $region21: #{tpu_custom_call.1} parent=5 // pred_check
        %p156 = pneg %p155
      $region22: #{tpu_custom_call.1} parent=5 // pred_check_branch
        %158 = sbr.rel (%p156) target = $region24
      $region23: #{tpu_custom_call.1} parent=5 // pred_region
        // Predicated region
        $region25: #{tpu_custom_call.1} parent=23 // pred_check
          %p159 = pneg %p34
        $region26: #{tpu_custom_call.1} parent=23 // pred_check_branch
          %161 = sbr.rel (%p159) target = $region28
        $region27: #{tpu_custom_call.1} parent=23 // pred_region
          %p162 = scmp.lt.s32.totalorder %s14, 3
          %s163 = scalar_select %p162, %s14, 3
          %s164 = smul.addr %s163, 8
          %s165 = scalar_lea.vmem %s0, %s164
        $region28: #{tpu_custom_call.1} parent=23 // pred_fallthru
          _
      $region24: #{tpu_custom_call.1} parent=5 // pred_fallthru
        _
      %p166 = scmp.le.s32.totalorder 1, %s14
      %p167 = scmp.lt.s32.totalorder %s14, 5
      %p168 = pnand %p166, %p167
      %p169 = pneg %p168
      // Predicated region
      $region29: #{tpu_custom_call.1} parent=5 // pred_check
        _
      $region30: #{tpu_custom_call.1} parent=5 // pred_check_branch
        %171 = sbr.rel (%p168) target = $region32
      $region31: #{tpu_custom_call.1} parent=5 // pred_region
        %s172 = ssub.s32 %s14, 1
        %p173 = scmp.lt.s32.totalorder %s19, 3
        %s174 = scalar_select %p173, %s19, 3
        %s175 = smul.addr %s174, 8
        %s176 = scalar_lea.vmem %s0, %s175
        %p177 = pneg %p40
        %p178 = pneg %p37
        %p179 = pneg %p61
        %p180 = pneg %p58
        %p181 = pneg %p82
        %p182 = pneg %p79
        %p183 = pneg %p108
        %p184 = pneg %p105
        %s185 = sand.u32 %s95, 1
        %s186 = scalar_lea.sflag [#allocation3], %s185
        %s187 = sand.u32 %s95, 1
        %s188 = smul.addr %s187, 8
        %s189 = scalar_lea.vmem [#allocation2], %s188
        %p190 = pneg %p134
        %p191 = pneg %p131
        %p192 = scmp.lt.s32.totalorder %s19, 3
        %s193 = scalar_select %p192, %s19, 3
        %s194 = smul.addr %s193, 8
        %s195 = scalar_lea.vmem %s4, %s194
        %p196 = scmp.lt.s32.totalorder %s19, 3
        %s197 = scalar_select %p196, %s19, 3
        %s198 = smul.addr %s197, 8
        %s199 = scalar_lea.vmem %s0, %s198
        %p200 = scmp.lt.s32.totalorder %s19, 3
        %s201 = scalar_select %p200, %s19, 3
        %s202 = smul.addr %s201, 8
        %s203 = scalar_lea.vmem %s4, %s202
        %v204 = vld [vmem:[%s199] sm:$0xff]
        %v205 = vld [vmem:[%s1] sm:$0xff]
        %v206 = vld [vmem:[%s1 + $0x8] sm:$0xff]
        %vm207 = vcmask 130048
        %v209 = vsel %vm207, %v204, 0
        %211 = vmatpush.msra.mxu0 0.0
        %212 = vmatpush.msra.mxu0 0.0
        %213 = vmatpush.msra.mxu0 0.0
        %214 = vmatpush.msra.mxu0 0.0
        %215 = vmatpush.msra.mxu0 0.0
        %216 = vmatpush.msra.mxu0 0.0
        %217 = vmatpush.msra.mxu0 0.0
        %218 = vmatpush.msra.mxu0 0.0
        %219 = vmatpush.msra.mxu0 0.0
        %220 = vmatpush.msra.mxu0 0.0
        %221 = vmatpush.msra.mxu0 0.0
        %222 = vmatpush.msra.mxu0 0.0
        %223 = vmatpush.msra.mxu0 0.0
        %224 = vmatpush.msra.mxu0 0.0
        %225 = vmatpush.msra.mxu0 %v206
        %226 = vmatpush.msra.mxu0 %v205
        %227 = vmatmul.f32.gmra.mxu0 %v209
        %v228 = vpop.f32.mrf.mxu0
        %v229 = vadd.f32 0.0, %v228
        %230 = vdwg.mxu0
        %vm231 = vcmask 523264
        %232 = vst.msk [vmem:[%s189] sm:$0xff] %vm231, %v229
        %v233 = vld [vmem:[%s2] sm:$0xff]
        %v234 = vld [vmem:[%s2 + $0x8] sm:$0xff]
        %v235 = vld [vmem:[%s2 + $0x10] sm:$0xff]
        %v236 = vld [vmem:[%s2 + $0x18] sm:$0xff]
        %v237 = vld [vmem:[%s2 + $0x20] sm:$0xff]
        %v238 = vld [vmem:[%s2 + $0x28] sm:$0xff]
        %v239 = vld [vmem:[%s2 + $0x30] sm:$0xff]
        %v240 = vld [vmem:[%s2 + $0x38] sm:$0xff]
        %v242 = vsel %vm231, %v229, 0
        %244 = vmatpush.msra.mxu0 0.0
        %245 = vmatpush.msra.mxu0 0.0
        %246 = vmatpush.msra.mxu0 0.0
        %247 = vmatpush.msra.mxu0 0.0
        %248 = vmatpush.msra.mxu0 0.0
        %249 = vmatpush.msra.mxu0 0.0
        %250 = vmatpush.msra.mxu0 0.0
        %251 = vmatpush.msra.mxu0 0.0
        %252 = vmatpush.msra.mxu0 %v240
        %253 = vmatpush.msra.mxu0 %v239
        %254 = vmatpush.msra.mxu0 %v238
        %255 = vmatpush.msra.mxu0 %v237
        %256 = vmatpush.msra.mxu0 %v236
        %257 = vmatpush.msra.mxu0 %v235
        %258 = vmatpush.msra.mxu0 %v234
        %259 = vmatpush.msra.mxu0 %v233
        %260 = vmatmul.f32.gmra.mxu0 %v242
        %v261 = vpop.f32.mrf.mxu0
        %v262 = vadd.f32 0.0, %v261
        %263 = vdwg.mxu0
        %264 = vst.msk [vmem:[%s203] sm:$0xff] %vm207, %v262
        %s265 = sand.u32 %s95, 1
        %s266 = scalar_lea.sflag [#allocation3], %s265
        %s267 = sand.u32 %s95, 1
        %s268 = smul.addr %s267, 8
        %s269 = scalar_lea.vmem [#allocation2], %s268
        %p270 = scmp.lt.s32.totalorder %s19, 3
        %s271 = scalar_select %p270, %s19, 3
        %s272 = smul.addr %s271, 8
        %s273 = scalar_lea.vmem %s4, %s272
        // Predicated region
        $region33: #{tpu_custom_call.1} parent=31 // pred_check
          %p274 = pneg %p105
        $region34: #{tpu_custom_call.1} parent=31 // pred_check_branch
          %276 = sbr.rel (%p274) target = $region36
        $region35: #{tpu_custom_call.1} parent=31 // pred_region
          %278 = vsyncadd %s266, 0
          %s279 = smul.addr %s19, 8
          %s280 = scalar_lea.hbm %s3, %s279
          %s282 = sshll.u32 %s269, 4
          %s283 = int_to_ptr.vmem [resolvable:$true] %s282
          %s284 = sshll.u32 %s280, 4
          %s285 = int_to_ptr.hbm [resolvable:$true] %s284
          %287 = dma.vmem_to_hbm [thread:$0]  %s283, 128, %s285, %s266
        $region36: #{tpu_custom_call.1} parent=31 // pred_fallthru
          _
        // Predicated region
        $region37: #{tpu_custom_call.1} parent=31 // pred_check
          %p288 = pneg %p131
        $region38: #{tpu_custom_call.1} parent=31 // pred_check_branch
          %290 = sbr.rel (%p288) target = $region40
        $region39: #{tpu_custom_call.1} parent=31 // pred_region
          _
        $region40: #{tpu_custom_call.1} parent=31 // pred_fallthru
          _
      $region32: #{tpu_custom_call.1} parent=5 // pred_fallthru
        _
      %p291 = scmp.le.s32.totalorder 2, %s14
      // Predicated region
      $region41: #{tpu_custom_call.1} parent=5 // pred_check
        %p292 = pneg %p291
      $region42: #{tpu_custom_call.1} parent=5 // pred_check_branch
        %294 = sbr.rel (%p292) target = $region44
      $region43: #{tpu_custom_call.1} parent=5 // pred_region
        %s295 = ssub.s32 %s14, 2
        // Predicated region
        $region45: #{tpu_custom_call.1} parent=43 // pred_check
          %p296 = pneg %p111
        $region46: #{tpu_custom_call.1} parent=43 // pred_check_branch
          %298 = sbr.rel (%p296) target = $region48
        $region47: #{tpu_custom_call.1} parent=43 // pred_region
          %s299 = sand.u32 %s96, 1
          %s300 = scalar_lea.sflag [#allocation3], %s299
          %s301 = sand.u32 %s96, 1
          %s302 = smul.addr %s301, 8
          %s303 = scalar_lea.vmem [#allocation2], %s302
          %305 = dma.done %s300, 128
        $region48: #{tpu_custom_call.1} parent=43 // pred_fallthru
          _
        // Predicated region
        $region49: #{tpu_custom_call.1} parent=43 // pred_check
          %p306 = pneg %p137
        $region50: #{tpu_custom_call.1} parent=43 // pred_check_branch
          %308 = sbr.rel (%p306) target = $region52
        $region51: #{tpu_custom_call.1} parent=43 // pred_region
          %p309 = scmp.lt.s32.totalorder %s20, 3
          %s310 = scalar_select %p309, %s20, 3
          %s311 = smul.addr %s310, 8
          %s312 = scalar_lea.vmem %s4, %s311
        $region52: #{tpu_custom_call.1} parent=43 // pred_fallthru
          _
      $region44: #{tpu_custom_call.1} parent=5 // pred_fallthru
        _
    $region6: #{tpu_custom_call.1} parent=1 // loop_footer
      %s18 = sadd.s32 1, %s14
    $region7: #{tpu_custom_call.1} parent=1 // loop_footer_branch
      %13 = sbr.rel target = $region3
    $region8: #{tpu_custom_call.1} parent=1 // loop_exit
      _
    %313 = vsyncpa [#allocation3], 1
    %s314 = scalar_lea.sflag [#allocation3], 1
    %315 = vsyncpa %s314, 1

</llo_original>
